<compile_context>
chip_gen: v5e
topology: v5e:2x2
jax: 0.10.0
libtpu: 0.0.40
codegen_flags: <defaults>
</compile_context>

<pallas_src>
import numpy as np
import jax
import jax.numpy as jnp
from jax.experimental import pallas as pl
from jax.experimental.pallas import tpu as pltpu


# --------------------------------------------------------------------------- #
# Parameter setup (PyTorch buffer equivalent)
# --------------------------------------------------------------------------- #
def make_positional_encoding(embed_dim: int, num_views: int) -> jnp.ndarray:
    """Reproduce the PyTorch buffer `pe` of shape (1, num_views+1, embed_dim)."""
    n = num_views + 1
    position = np.arange(n, dtype=np.float32)[:, None]                      # (n, 1)
    div_term = np.exp(np.arange(0, embed_dim, 2, dtype=np.float32)
                      * -(np.log(10000.0) / embed_dim))                     # (ceil(E/2),)
    pe = np.zeros((n, embed_dim), dtype=np.float32)
    pe[:, 0::2] = np.sin(position * div_term)
    pe[:, 1::2] = np.cos(position * div_term)[:, : embed_dim // 2]
    return jnp.asarray(pe[None, :, :])                                      # (1, n, E)


def prepare_pe_flat(pe: jnp.ndarray) -> jnp.ndarray:
    """Flatten pe (1, S, E) -> (1, S*E) once at module init (stays f32)."""
    _, S, E = pe.shape
    return jnp.reshape(pe, (1, S * E))


# --------------------------------------------------------------------------- #
# Kernel
# --------------------------------------------------------------------------- #
def _pe_add_kernel(x_ref, pe_ref, o_ref):
    # x tile (Bt, Dt); pe tile (1, Dt) broadcast over rows. Add in f32 (matches
    # the f32 PyTorch buffer), cast to the output dtype on store.
    o_ref[...] = (x_ref[...].astype(jnp.float32) + pe_ref[...]).astype(o_ref.dtype)


# --------------------------------------------------------------------------- #
# Tiling / generation heuristics
# --------------------------------------------------------------------------- #
def _default_tile_bytes() -> int:
    """Per-generation byte budget for one (Bt, Dt) block."""
    try:
        kind = jax.devices()[0].device_kind.lower()
    except Exception:  # pragma: no cover
        kind = ""
    if "v7" in kind:
        return 8 << 20   # needs explicit vmem_limit_bytes (set below)
    if "v6" in kind:
        return 4 << 20   # double-buffered x+out = 16 MiB < 32 MiB default scoped
    return 3 << 20       # v5e / unknown: stay inside the 16 MiB default scoped VMEM


def _round_up(v: int, m: int) -> int:
    return ((v + m - 1) // m) * m


def _choose_tiles(B: int, D: int, itemsize: int, tile_bytes: int):
    """Pick (Bt, Dt): lane-dense, sublane-aligned, ~tile_bytes per block,
    with enough grid steps for pipelining / megacore sharding."""
    # Lane (last-dim) tile: full D if an 8-row slab fits the budget, otherwise a
    # multiple of 128 (keeps unmasked, lane-dense stores).
    if D * itemsize * 8 <= tile_bytes or D <= 128:
        Dt = D
    else:
        Dt = min(D, max(128, (tile_bytes // (8 * itemsize)) // 128 * 128))

    # Row (second-to-last dim) tile: fill the byte budget; multiple of 32 so
    # bf16/int8 sublane packing stays dense, floor 8 for f32 alignment.
    Bt = max(8, (tile_bytes // (Dt * itemsize)) // 8 * 8)
    if Bt >= 32:
        Bt = Bt // 32 * 32

    if B > Bt:
        # Keep >= ~4 row steps when B is large so both v7x TensorCores engage
        # and the pipeline has depth.
        Bt = min(Bt, max(32 if B >= 32 else 8, _round_up(pl.cdiv(B, 4), 8)))
    else:
        Bt = B  # full dim is always a legal block size

    # If everything still collapsed into a single block, split to get >= 2 steps.
    if pl.cdiv(B, Bt) * pl.cdiv(D, Dt) < 2:
        if B >= 16:
            Bt = max(8, _round_up(pl.cdiv(B, 4), 8))
        elif D > 512:
            Dt = max(128, _round_up(pl.cdiv(D, 4), 128))
    return Bt, Dt


# --------------------------------------------------------------------------- #
# Forward wrapper
# --------------------------------------------------------------------------- #
def positional_encoding_forward(x: jnp.ndarray,
                                pe_flat: jnp.ndarray,
                                *,
                                small_bytes: int = 256 << 10,
                                max_block_bytes: int | None = None) -> jnp.ndarray:
    """x: (B, S, E); pe_flat: (1, S*E) f32 (precomputed once) -> x + pe."""
    B, S, E = x.shape
    D = S * E
    if pe_flat.ndim == 3:                     # tolerate un-flattened pe
        pe_flat = jnp.reshape(pe_flat, (1, D))
    assert pe_flat.shape == (1, D)
    pe_flat = pe_flat.astype(jnp.float32)     # add is done in f32 in-kernel

    itemsize = jnp.dtype(x.dtype).itemsize
    total_bytes = B * D * itemsize
    x_flat = x.reshape(B, D)                  # lane-dense flattened layout (free)

    cost = pl.CostEstimate(flops=B * D, transcendentals=0,
                           bytes_accessed=2 * B * D * itemsize + D * 4)

    if total_bytes <= small_bytes:
        # Whole problem in one block: no grid, no per-step pipeline overhead.
        out_flat = pl.pallas_call(
            _pe_add_kernel,
            out_shape=jax.ShapeDtypeStruct((B, D), x.dtype),
            in_specs=[
                pl.BlockSpec((B, D), lambda: (0, 0)),
                pl.BlockSpec((1, D), lambda: (0, 0)),
            ],
            out_specs=pl.BlockSpec((B, D), lambda: (0, 0)),
            cost_estimate=cost,
        )(x_flat, pe_flat)
        return out_flat.reshape(B, S, E)

    # -------- gridded, pipelined path -------------------------------------- #
    tile_bytes = max_block_bytes if max_block_bytes is not None else _default_tile_bytes()
    Bt, Dt = _choose_tiles(B, D, itemsize, tile_bytes)
    grid = (pl.cdiv(B, Bt), pl.cdiv(D, Dt))

    # Double-buffered x tile + out tile (x dtype) + pe tile (f32) + headroom.
    needed_vmem = 2 * (2 * Bt * Dt * itemsize + Dt * 4) + (2 << 20)
    vmem_limit = None
    if needed_vmem > (16 << 20):              # exceeds the smallest default scoped VMEM
        vmem_limit = min(needed_vmem + (4 << 20), 56 << 20)

    out_flat = pl.pallas_call(
        _pe_add_kernel,
        out_shape=jax.ShapeDtypeStruct((B, D), x.dtype),
        grid_spec=pltpu.PrefetchScalarGridSpec(
            num_scalar_prefetch=0,
            grid=grid,
            in_specs=[
                pl.BlockSpec((Bt, Dt), lambda i, j: (i, j)),   # x row/lane tiles
                pl.BlockSpec((1, Dt), lambda i, j: (0, j)),    # broadcast pe table
            ],
            out_specs=pl.BlockSpec((Bt, Dt), lambda i, j: (i, j)),
        ),
        compiler_params=pltpu.CompilerParams(
            dimension_semantics=("parallel", "parallel"),
            vmem_limit_bytes=vmem_limit,
        ),
        cost_estimate=cost,
    )(x_flat, pe_flat)
    return out_flat.reshape(B, S, E)


# --------------------------------------------------------------------------- #
# Demo / correctness check
# --------------------------------------------------------------------------- #
if __name__ == "__main__":
    key = jax.random.PRNGKey(0)
    k1, k2, k3 = jax.random.split(key, 3)

    # Module config: embed_dim=32, num_views=7  ->  S = num_views + 1 = 8
    embed_dim, num_views = 32, 7
    seq = num_views + 1
    pe = make_positional_encoding(embed_dim, num_views)        # (1, 8, 32), f32
    pe_flat = prepare_pe_flat(pe)                               # hoisted, once

    # --- 1) Module's actual tiny shape: single-block (no-grid) path --------
    x = jax.random.normal(k1, (2, seq, embed_dim), dtype=jnp.float32)
    out = jax.block_until_ready(positional_encoding_forward(x, pe_flat))
    np.testing.assert_allclose(np.asarray(out), np.asarray(x + pe),
                               rtol=1e-6, atol=1e-6)

    # --- 2) Larger batch: exercise the row-tiled, pipelined grid path ------
    x2 = jax.random.normal(k2, (256, seq, embed_dim), dtype=jnp.float32)
    out2 = jax.block_until_ready(
        positional_encoding_forward(x2, pe_flat,
                                    small_bytes=0, max_block_bytes=32 * 1024))
    np.testing.assert_allclose(np.asarray(out2), np.asarray(x2 + pe),
                               rtol=1e-6, atol=1e-6)

    # --- 3) Wide embed: exercise lane-dim (Dt) tiling as well --------------
    embed_dim3 = 512
    pe3 = make_positional_encoding(embed_dim3, num_views)
    pe3_flat = prepare_pe_flat(pe3)
    x3 = jax.random.normal(k3, (16, seq, embed_dim3), dtype=jnp.float32)
    out3 = jax.block_until_ready(
        positional_encoding_forward(x3, pe3_flat,
                                    small_bytes=0, max_block_bytes=64 * 1024))
    np.testing.assert_allclose(np.asarray(out3), np.asarray(x3 + pe3),
                               rtol=1e-6, atol=1e-6)

    print("KERNEL_OK")
</pallas_src>

<mosaic_0001>
module attributes {stable_mosaic.version = 11 : i64} {
  func.func @_pe_add_kernel(%arg0: memref<2x256xf32, #tpu.memory_space<vmem>>, %arg1: memref<1x256xf32, #tpu.memory_space<vmem>>, %arg2: memref<2x256xf32, #tpu.memory_space<vmem>>) attributes {dimension_semantics = [], scalar_prefetch = 0 : i64, scratch_operands = 0 : i64, tpu.core_type = #tpu.core_type<tc>} {
    %c0 = arith.constant 0 : index
    %c0_0 = arith.constant 0 : index
    %0 = vector.load %arg0[%c0, %c0_0] : memref<2x256xf32, #tpu.memory_space<vmem>>, vector<2x256xf32>
    %c0_1 = arith.constant 0 : index
    %c0_2 = arith.constant 0 : index
    %1 = vector.load %arg1[%c0_1, %c0_2] : memref<1x256xf32, #tpu.memory_space<vmem>>, vector<1x256xf32>
    %2 = vector.broadcast %1 : vector<1x256xf32> to vector<2x256xf32>
    %3 = arith.addf %0, %2 : vector<2x256xf32>
    %c0_3 = arith.constant 0 : index
    %c0_4 = arith.constant 0 : index
    %4 = vector.load %arg2[%c0_3, %c0_4] : memref<2x256xf32, #tpu.memory_space<vmem>>, vector<2x256xf32>
    tpu.vector_store %arg2[%c0_3, %c0_4], %3 {strides = array<i32>} : memref<2x256xf32, #tpu.memory_space<vmem>>, vector<2x256xf32>,
    return
  }
}

</mosaic_0001>

<llo_original>
// kernel: tpu_custom_call.1
$region0: #{tpu_custom_call.1}
  #allocation0 [shape = 'u32[]', space=smem, size = 0x4, offset = 0x4, fixed_abs, tag = 'smem constant byte address 0x4 - core index']
  #allocation1 [shape = 'u32[72,128]{1,0:T(1,128)}', space=vmem, size = 0x9000, scoped, tag = 'internal scratch']
  %s0 = inlined_call_operand.hbm [shape: f32[2,256], index: 0, kind: input, shape index: {}]
  %s1 = inlined_call_operand.hbm [shape: f32[1,256], index: 1, kind: input, shape index: {}]
  %s2 = inlined_call_operand.hbm [shape: f32[2,256], index: 2, kind: output, shape index: {}]
  %s3 = sld [smem:[#allocation0]]
  $region26: #{tpu_custom_call.1} parent=0
    _
  %s5 = ssub.s32 1, %s3
  %s6 = scalar_select 0, %s5, %s3
  $region1: #{tpu_custom_call.1} parent=0
    #allocation2 [shape = 'u8[2048]{0}', space=vmem, size = 0x800, scoped, tag = 'input window, operand 0, single buffered']
    #allocation3 [shape = 's32[1]{0}', space=sflag, size = 0x4, scoped, tag = 'scoped memory for tpu_custom_call.1']
    #allocation4 [shape = 's32[1]{0}', space=sflag, size = 0x4, scoped, tag = 'scoped memory for tpu_custom_call.1']
    #allocation5 [shape = 'u8[1024]{0}', space=vmem, size = 0x400, scoped, tag = 'input window, operand 1, single buffered']
    #allocation6 [shape = 's32[1]{0}', space=sflag, size = 0x4, scoped, tag = 'scoped memory for tpu_custom_call.1']
    #allocation7 [shape = 'u8[2048]{0}', space=vmem, size = 0x800, scoped, tag = 'output window, operand 0, single buffered']
    %7 = vsyncpa [#allocation3], 0
    %8 = vsyncpa [#allocation6], 0
    %9 = vsyncpa [#allocation4], 0
    // Predicated region
    $region2: #{tpu_custom_call.1} parent=1 // pred_check
      _
    $region3: #{tpu_custom_call.1} parent=1 // pred_check_branch
      %11 = sbr.rel (0) target = $region5
    $region4: #{tpu_custom_call.1} parent=1 // pred_region
      %13 = vsyncadd [#allocation3], 0
      %s15 = sshll.u32 %s0, 4
      %s16 = int_to_ptr.hbm [resolvable:$true] %s15
      %s17 = sshll.u32 [#allocation2], 4
      %s18 = int_to_ptr.vmem [resolvable:$true] %s17
      %20 = dma.hbm_to_vmem [thread:$0]  %s16, 64, %s18, [#allocation3]
    $region5: #{tpu_custom_call.1} parent=1 // pred_fallthru
      _
    // Predicated region
    $region6: #{tpu_custom_call.1} parent=1 // pred_check
      _
    $region7: #{tpu_custom_call.1} parent=1 // pred_check_branch
      %22 = sbr.rel (0) target = $region9
    $region8: #{tpu_custom_call.1} parent=1 // pred_region
      %24 = vsyncadd [#allocation6], 0
      %s26 = sshll.u32 %s1, 4
      %s27 = int_to_ptr.hbm [resolvable:$true] %s26
      %s28 = sshll.u32 [#allocation5], 4
      %s29 = int_to_ptr.vmem [resolvable:$true] %s28
      %31 = dma.hbm_to_vmem [thread:$0]  %s27, 32, %s29, [#allocation6]
    $region9: #{tpu_custom_call.1} parent=1 // pred_fallthru
      _
    // Predicated region
    $region10: #{tpu_custom_call.1} parent=1 // pred_check
      _
    $region11: #{tpu_custom_call.1} parent=1 // pred_check_branch
      %33 = sbr.rel (0) target = $region13
    $region12: #{tpu_custom_call.1} parent=1 // pred_region
      %35 = dma.done [#allocation3], 64
    $region13: #{tpu_custom_call.1} parent=1 // pred_fallthru
      _
    // Predicated region
    $region14: #{tpu_custom_call.1} parent=1 // pred_check
      _
    $region15: #{tpu_custom_call.1} parent=1 // pred_check_branch
      %37 = sbr.rel (0) target = $region17
    $region16: #{tpu_custom_call.1} parent=1 // pred_region
      %39 = dma.done [#allocation6], 32
    $region17: #{tpu_custom_call.1} parent=1 // pred_fallthru
      _
    %v40 = vld [vmem:[#allocation2] sm:$0xf]
    %v41 = vld [vmem:[#allocation5] sm:$0x3]
    %v43 = vperm.slane %v41, 0
    %v44 = vperm.slane %v41, 1
    %v45 = vrot.slane %v44, 6
    %vm46 = vcmask 1041408
    %v47 = vsel %vm46, %v43, %v45
    %v49 = vadd.f32 %v40, %v47
    %50 = vst [vmem:[#allocation7] sm:$0xf] %v49
    // Predicated region
    $region18: #{tpu_custom_call.1} parent=1 // pred_check
      _
    $region19: #{tpu_custom_call.1} parent=1 // pred_check_branch
      %52 = sbr.rel (0) target = $region21
    $region20: #{tpu_custom_call.1} parent=1 // pred_region
      %54 = vsyncadd [#allocation4], 0
      %s56 = sshll.u32 [#allocation7], 4
      %s57 = int_to_ptr.vmem [resolvable:$true] %s56
      %s58 = sshll.u32 %s2, 4
      %s59 = int_to_ptr.hbm [resolvable:$true] %s58
      %61 = dma.vmem_to_hbm [thread:$0]  %s57, 64, %s59, [#allocation4]
    $region21: #{tpu_custom_call.1} parent=1 // pred_fallthru
      _
    // Predicated region
    $region22: #{tpu_custom_call.1} parent=1 // pred_check
      _
    $region23: #{tpu_custom_call.1} parent=1 // pred_check_branch
      %63 = sbr.rel (0) target = $region25
    $region24: #{tpu_custom_call.1} parent=1 // pred_region
      %65 = dma.done [#allocation4], 64
    $region25: #{tpu_custom_call.1} parent=1 // pred_fallthru
      _
    %66 = vsyncpa [#allocation3], 1
    %67 = vsyncpa [#allocation6], 1
    %68 = vsyncpa [#allocation4], 1

</llo_original>
